<compile_context>
chip_gen: v5e
topology: v5e:2x2
jax: 0.10.0
libtpu: 0.0.40
codegen_flags: <defaults>
</compile_context>

<pallas_src>
import functools
import math

import jax
import jax.numpy as jnp
from jax.experimental import pallas as pl
from jax.experimental.pallas import tpu as pltpu


# ----------------------------------------------------------------------------
# Tiling / VMEM helpers
# ----------------------------------------------------------------------------
def _round_up(x, m):
    return -(-x // m) * m


def _vmem_limit_bytes():
    """Scoped VMEM limit: ~75% of physical per-core VMEM, capped at 96 MiB."""
    cap = 64 * 1024 * 1024  # conservative fallback (v7x per-TensorCore VMEM)
    try:
        info = pltpu.get_tpu_info()
        cap = int(getattr(info, "vmem_capacity_bytes", cap)) or cap
    except Exception:
        pass
    return int(min(cap * 3 // 4, 96 * 1024 * 1024))


def _batch_tiling(B, lane_dims, vmem_budget_bytes, max_tile=8192):
    """Pick a batch tile from a VMEM budget.

    Each per-row array is f32, lane-padded to a multiple of 128 in VMEM and
    double-buffered by the pipeline: bytes/row = sum(round_up(d,128)) * 4 * 2.
    Returns (tile_rows, num_grid_steps).
    """
    per_row = sum(_round_up(max(int(d), 1), 128) for d in lane_dims) * 4 * 2
    cap = (vmem_budget_bytes // per_row // 8) * 8
    cap = max(8, min(int(max_tile), cap))
    if B <= cap:
        # Single full-extent block (block dim == array dim is always legal,
        # even when B is not a multiple of 8); no tail masking needed.
        return B, 1
    return cap, -(-B // cap)


def _valid_rows(tb, B):
    """(tb, 1) bool mask: global row index < B for the current grid step."""
    rows = jax.lax.broadcasted_iota(jnp.int32, (tb, 1), 0) + pl.program_id(0) * tb
    return rows < B


# ----------------------------------------------------------------------------
# Kernels
# ----------------------------------------------------------------------------
def _log_prob_kernel(iv_half_ref, m_iv_ref, c0_ref, dm_ref, dlv_ref, cp_ref,
                     w_ref, out_ref, *, tb, B, mask_tail):
    """Per-tile partial sum of  w_b * sum_k prob[b,k] * cond_prob[b,k].

    prob[b,k] = c0[k] + ((dm^2 + exp(dlv)) @ (-0.5/var))[b,k] + (dm @ (mean/var))[b,k]
              = 0.5*sum_N(-log(2*pi*var)) - 0.5*sum_N(((dm-mean)^2 + exp(dlv))/var)
    """
    dm = dm_ref[...]                                     # (tb, N)
    q = dm * dm + jnp.exp(dlv_ref[...])                  # (tb, N)
    prob = (c0_ref[...]                                  # (1, K)
            + jnp.dot(q, iv_half_ref[...], preferred_element_type=jnp.float32)
            + jnp.dot(dm, m_iv_ref[...], preferred_element_type=jnp.float32))
    contrib = prob * cp_ref[...] * w_ref[...]            # (tb, K)
    if mask_tail:
        contrib = jnp.where(_valid_rows(tb, B), contrib, 0.0)
    out_ref[...] = jnp.broadcast_to(jnp.sum(contrib), out_ref.shape)


def _entropy_kernel(inp_ref, w_ref, out_ref, *, tb, B, mask_tail):
    inp = inp_ref[...]                                   # (tb, K)
    contrib = (-inp * jnp.log(inp + 1e-10)) * w_ref[...]
    if mask_tail:
        contrib = jnp.where(_valid_rows(tb, B), contrib, 0.0)
    out_ref[...] = jnp.broadcast_to(jnp.sum(contrib), out_ref.shape)


def _log_prob_entropy_kernel(iv_half_ref, m_iv_ref, c0_ref, dm_ref, dlv_ref,
                             cp_ref, w_ref, lp_ref, ent_ref, *, tb, B, mask_tail):
    """Fused log_prob + entropy partials: one HBM pass over cond_prob/weight."""
    dm = dm_ref[...]
    cp = cp_ref[...]
    w = w_ref[...]
    q = dm * dm + jnp.exp(dlv_ref[...])
    prob = (c0_ref[...]
            + jnp.dot(q, iv_half_ref[...], preferred_element_type=jnp.float32)
            + jnp.dot(dm, m_iv_ref[...], preferred_element_type=jnp.float32))
    lp_c = prob * cp * w
    ent_c = (-cp * jnp.log(cp + 1e-10)) * w
    if mask_tail:
        m = _valid_rows(tb, B)
        lp_c = jnp.where(m, lp_c, 0.0)
        ent_c = jnp.where(m, ent_c, 0.0)
    lp_ref[...] = jnp.broadcast_to(jnp.sum(lp_c), lp_ref.shape)
    ent_ref[...] = jnp.broadcast_to(jnp.sum(ent_c), ent_ref.shape)


def _compute_prob_kernel(iv_half_ref, m_iv_ref, c0_ref, data_ref, out_ref):
    # TODO(synk): no log-sum-exp stabilization on exp(half_s) -- this matches
    # the PyTorch reference exactly (the 1e-10 epsilon only guards underflow).
    d = data_ref[...]                                    # (tb, N)
    half_s = (c0_ref[...]
              + jnp.dot(d * d, iv_half_ref[...], preferred_element_type=jnp.float32)
              + jnp.dot(d, m_iv_ref[...], preferred_element_type=jnp.float32))
    prob = jnp.exp(half_s)                               # (tb, K)
    denom = jnp.sum(prob, axis=-1, keepdims=True) + 1e-10
    out_ref[...] = prob * pl.reciprocal(denom, approx=False)


# ----------------------------------------------------------------------------
# GMM_Model: JAX/Pallas port
# ----------------------------------------------------------------------------
class GMMModelPallas:
    def __init__(self, N, K, mean=None, var=None, prior=None, key=None,
                 max_tile=8192):
        self.N = int(N)
        self.K = int(K)
        if mean is not None:
            self.mean = jnp.asarray(mean, jnp.float32).reshape(N, K)
            self.std = jnp.sqrt(jnp.asarray(var, jnp.float32)).reshape(N, K)
        else:
            if key is None:
                key = jax.random.PRNGKey(0)
            self.mean = jax.random.normal(key, (N, K), dtype=jnp.float32)
            self.std = jnp.ones((N, K), dtype=jnp.float32)

        self._max_tile = int(max_tile)
        self._vmem_limit = _vmem_limit_bytes()

        # Parameter-derived tensors, cached once (mean/std fixed per instance);
        # kernels never recompute log()/divide over the parameters.
        var_ = self.std * self.std
        inv_var = 1.0 / var_
        self._iv_half = (-0.5) * inv_var                              # (N, K)
        self._m_iv = self.mean * inv_var                              # (N, K)
        logc = jnp.sum(-jnp.log(var_ * (2.0 * math.pi)), axis=0)      # (K,)
        m2s = jnp.sum(self.mean * self._m_iv, axis=0)                 # (K,)
        self._c0 = (0.5 * (logc - m2s)).reshape(1, self.K)            # (1, K)

    def get_para(self):
        # PyTorch stores (1, N, K); expose the same shape.
        return self.mean[None], self.std[None]

    def _compiler_params(self):
        return pltpu.CompilerParams(dimension_semantics=("parallel",),
                                    vmem_limit_bytes=self._vmem_limit)

    # ------------------------------------------------------------------ #
    def log_prob(self, data_mean, data_logvar, cond_prob, weight):
        N, K = self.N, self.K
        dm = jnp.asarray(data_mean, jnp.float32).reshape(-1, N)
        B = dm.shape[0]
        dlv = jnp.asarray(data_logvar, jnp.float32).reshape(B, N)
        cp = jnp.asarray(cond_prob, jnp.float32).reshape(B, K)
        w = jnp.asarray(weight, jnp.float32).reshape(B, 1)

        tb, g = _batch_tiling(B, (N, N, K, 1), self._vmem_limit // 3,
                              self._max_tile)
        kernel = functools.partial(_log_prob_kernel, tb=tb, B=B,
                                   mask_tail=(B % tb != 0))
        partials = pl.pallas_call(
            kernel,
            out_shape=jax.ShapeDtypeStruct((g, 8, 128), jnp.float32),
            grid=(g,),
            in_specs=[
                pl.BlockSpec((N, K), lambda i: (0, 0)),     # -0.5 / var
                pl.BlockSpec((N, K), lambda i: (0, 0)),     # mean / var
                pl.BlockSpec((1, K), lambda i: (0, 0)),     # c0
                pl.BlockSpec((tb, N), lambda i: (i, 0)),    # data_mean
                pl.BlockSpec((tb, N), lambda i: (i, 0)),    # data_logvar
                pl.BlockSpec((tb, K), lambda i: (i, 0)),    # cond_prob
                pl.BlockSpec((tb, 1), lambda i: (i, 0)),    # weight
            ],
            out_specs=pl.BlockSpec((1, 8, 128), lambda i: (i, 0, 0)),
            compiler_params=self._compiler_params(),
        )(self._iv_half, self._m_iv, self._c0, dm, dlv, cp, w)
        return jnp.sum(partials[:, 0, 0])

    # ------------------------------------------------------------------ #
    def compute_prob(self, data):
        N, K = self.N, self.K
        d = jnp.asarray(data, jnp.float32).reshape(-1, N)
        B = d.shape[0]

        tb, g = _batch_tiling(B, (N, K), self._vmem_limit // 3, self._max_tile)
        pc = pl.pallas_call(
            _compute_prob_kernel,
            out_shape=jax.ShapeDtypeStruct((B, K), jnp.float32),
            grid=(g,),
            in_specs=[
                pl.BlockSpec((N, K), lambda i: (0, 0)),
                pl.BlockSpec((N, K), lambda i: (0, 0)),
                pl.BlockSpec((1, K), lambda i: (0, 0)),
                pl.BlockSpec((tb, N), lambda i: (i, 0)),
            ],
            out_specs=pl.BlockSpec((tb, K), lambda i: (i, 0)),
            compiler_params=self._compiler_params(),
        )(self._iv_half, self._m_iv, self._c0, d)
        return pc

    # ------------------------------------------------------------------ #
    def compute_entropy(self, inputs, weight):
        inp = jnp.asarray(inputs, jnp.float32)
        K = inp.shape[-1]
        inp = inp.reshape(-1, K)
        B = inp.shape[0]
        w = jnp.asarray(weight, jnp.float32).reshape(B, 1)

        tb, g = _batch_tiling(B, (K, 1), self._vmem_limit // 3, self._max_tile)
        kernel = functools.partial(_entropy_kernel, tb=tb, B=B,
                                   mask_tail=(B % tb != 0))
        partials = pl.pallas_call(
            kernel,
            out_shape=jax.ShapeDtypeStruct((g, 8, 128), jnp.float32),
            grid=(g,),
            in_specs=[
                pl.BlockSpec((tb, K), lambda i: (i, 0)),
                pl.BlockSpec((tb, 1), lambda i: (i, 0)),
            ],
            out_specs=pl.BlockSpec((1, 8, 128), lambda i: (i, 0, 0)),
            compiler_params=self._compiler_params(),
        )(inp, w)
        return jnp.sum(partials[:, 0, 0])

    # ------------------------------------------------------------------ #
    def log_prob_and_entropy(self, data_mean, data_logvar, cond_prob, weight):
        """Fused log_prob + compute_entropy(cond_prob, weight) (one HBM pass)."""
        N, K = self.N, self.K
        dm = jnp.asarray(data_mean, jnp.float32).reshape(-1, N)
        B = dm.shape[0]
        dlv = jnp.asarray(data_logvar, jnp.float32).reshape(B, N)
        cp = jnp.asarray(cond_prob, jnp.float32).reshape(B, K)
        w = jnp.asarray(weight, jnp.float32).reshape(B, 1)

        tb, g = _batch_tiling(B, (N, N, K, 1), self._vmem_limit // 3,
                              self._max_tile)
        kernel = functools.partial(_log_prob_entropy_kernel, tb=tb, B=B,
                                   mask_tail=(B % tb != 0))
        lp_p, ent_p = pl.pallas_call(
            kernel,
            out_shape=(jax.ShapeDtypeStruct((g, 8, 128), jnp.float32),
                       jax.ShapeDtypeStruct((g, 8, 128), jnp.float32)),
            grid=(g,),
            in_specs=[
                pl.BlockSpec((N, K), lambda i: (0, 0)),
                pl.BlockSpec((N, K), lambda i: (0, 0)),
                pl.BlockSpec((1, K), lambda i: (0, 0)),
                pl.BlockSpec((tb, N), lambda i: (i, 0)),
                pl.BlockSpec((tb, N), lambda i: (i, 0)),
                pl.BlockSpec((tb, K), lambda i: (i, 0)),
                pl.BlockSpec((tb, 1), lambda i: (i, 0)),
            ],
            out_specs=(pl.BlockSpec((1, 8, 128), lambda i: (i, 0, 0)),
                       pl.BlockSpec((1, 8, 128), lambda i: (i, 0, 0))),
            compiler_params=self._compiler_params(),
        )(self._iv_half, self._m_iv, self._c0, dm, dlv, cp, w)
        return jnp.sum(lp_p[:, 0, 0]), jnp.sum(ent_p[:, 0, 0])

    def forward(self):
        # PyTorch forward() body is `pass` — nothing to compute.
        return None


# ----------------------------------------------------------------------------
# Pure-JAX reference (broadcast form, mirrors the PyTorch code exactly)
# ----------------------------------------------------------------------------
def _ref_log_prob(mean, std, dm, dlv, cp, w):
    var = std * std
    term1 = jnp.sum(-jnp.log(var * 2.0 * math.pi), axis=0) * 0.5
    diff = dm[:, :, None] - mean[None, :, :]
    term2 = jnp.sum(-(diff * diff + jnp.exp(dlv)[:, :, None]) / var[None], axis=1) * 0.5
    prob = term2 + term1[None, :]
    return jnp.sum(jnp.sum(prob * cp, axis=-1) * w)


def _ref_compute_prob(mean, std, data):
    var = std * std
    diff = data[:, :, None] - mean[None, :, :]
    prob = jnp.exp(jnp.sum(-jnp.log(var * 2.0 * math.pi)[None] - diff * diff / var[None],
                           axis=1) * 0.5)
    return prob / (jnp.sum(prob, axis=-1, keepdims=True) + 1e-10)


def _ref_entropy(inputs, weight):
    e1 = jnp.sum(-inputs * jnp.log(inputs + 1e-10), axis=-1)
    return jnp.sum(e1 * weight)


if __name__ == "__main__":
    import numpy as np

    B, N, K = 8, 32, 16
    key = jax.random.PRNGKey(0)
    k_mean, k_dm, k_lv, k_cp, k_w = jax.random.split(key, 5)

    model = GMMModelPallas(N, K, key=k_mean)

    data_mean = jax.random.normal(k_dm, (B, N), dtype=jnp.float32)
    data_logvar = 0.1 * jax.random.normal(k_lv, (B, N), dtype=jnp.float32)
    cond_prob = jax.nn.softmax(jax.random.normal(k_cp, (B, K), dtype=jnp.float32), axis=-1)
    weight = jax.random.uniform(k_w, (B,), dtype=jnp.float32)

    # Run the Pallas kernels.
    lp = jax.block_until_ready(model.log_prob(data_mean, data_logvar, cond_prob, weight))
    pc = jax.block_until_ready(model.compute_prob(data_mean))
    ent = jax.block_until_ready(model.compute_entropy(cond_prob, weight))
    lp_f, ent_f = jax.block_until_ready(
        model.log_prob_and_entropy(data_mean, data_logvar, cond_prob, weight))
    _ = model.forward()  # PyTorch forward() is a no-op

    # Sanity check against the pure-JAX reference.  The MXU rewrite of
    # (dm - mean)^2 introduces mild cancellation, so agreement is to
    # f32-matmul tolerance rather than bit-exact.
    lp_ref = _ref_log_prob(model.mean, model.std, data_mean, data_logvar, cond_prob, weight)
    pc_ref = _ref_compute_prob(model.mean, model.std, data_mean)
    ent_ref = _ref_entropy(cond_prob, weight)

    np.testing.assert_allclose(np.asarray(lp), np.asarray(lp_ref), rtol=5e-4, atol=1e-3)
    np.testing.assert_allclose(np.asarray(pc), np.asarray(pc_ref), rtol=1e-3, atol=1e-6)
    np.testing.assert_allclose(np.asarray(ent), np.asarray(ent_ref), rtol=1e-5, atol=1e-6)
    np.testing.assert_allclose(np.asarray(lp_f), np.asarray(lp_ref), rtol=5e-4, atol=1e-3)
    np.testing.assert_allclose(np.asarray(ent_f), np.asarray(ent_ref), rtol=1e-5, atol=1e-6)

    # Exercise the multi-tile + ragged-tail masking path with a forced tiny
    # tile (B=20, tb=8 -> 3 grid steps, last tile has 4 valid rows).
    B2 = 20
    model_small = GMMModelPallas(N, K, key=k_mean, max_tile=8)
    k_dm2, k_lv2, k_cp2, k_w2 = jax.random.split(jax.random.PRNGKey(1), 4)
    dm2 = jax.random.normal(k_dm2, (B2, N), dtype=jnp.float32)
    dlv2 = 0.1 * jax.random.normal(k_lv2, (B2, N), dtype=jnp.float32)
    cp2 = jax.nn.softmax(jax.random.normal(k_cp2, (B2, K), dtype=jnp.float32), axis=-1)
    w2 = jax.random.uniform(k_w2, (B2,), dtype=jnp.float32)

    lp2 = jax.block_until_ready(model_small.log_prob(dm2, dlv2, cp2, w2))
    pc2 = jax.block_until_ready(model_small.compute_prob(dm2))
    ent2 = jax.block_until_ready(model_small.compute_entropy(cp2, w2))

    np.testing.assert_allclose(
        np.asarray(lp2),
        np.asarray(_ref_log_prob(model.mean, model.std, dm2, dlv2, cp2, w2)),
        rtol=5e-4, atol=1e-3)
    np.testing.assert_allclose(
        np.asarray(pc2), np.asarray(_ref_compute_prob(model.mean, model.std, dm2)),
        rtol=1e-3, atol=1e-6)
    np.testing.assert_allclose(
        np.asarray(ent2), np.asarray(_ref_entropy(cp2, w2)), rtol=1e-5, atol=1e-6)

    print("KERNEL_OK")
</pallas_src>

<mosaic_0001>
module attributes {stable_mosaic.version = 11 : i64} {
  func.func @_log_prob_kernel(%arg0: i32, %arg1: memref<32x16xf32, #tpu.memory_space<vmem>>, %arg2: memref<32x16xf32, #tpu.memory_space<vmem>>, %arg3: memref<1x16xf32, #tpu.memory_space<vmem>>, %arg4: memref<8x32xf32, #tpu.memory_space<vmem>>, %arg5: memref<8x32xf32, #tpu.memory_space<vmem>>, %arg6: memref<8x16xf32, #tpu.memory_space<vmem>>, %arg7: memref<8x1xf32, #tpu.memory_space<vmem>>, %arg8: memref<1x8x128xf32, #tpu.memory_space<vmem>>) attributes {dimension_semantics = [#tpu.dimension_semantics<parallel>], iteration_bounds = array<i64: 1>, scalar_prefetch = 0 : i64, scratch_operands = 0 : i64, tpu.core_type = #tpu.core_type<tc>, window_params = [{pipeline_mode = #tpu.pipeline_mode<synchronous>, transform_indices = @transform_0, window_bounds = array<i64: 32, 16>}, {pipeline_mode = #tpu.pipeline_mode<synchronous>, transform_indices = @transform_1, window_bounds = array<i64: 32, 16>}, {pipeline_mode = #tpu.pipeline_mode<synchronous>, transform_indices = @transform_2, window_bounds = array<i64: 1, 16>}, {transform_indices = @transform_3, window_bounds = array<i64: 8, 32>}, {transform_indices = @transform_4, window_bounds = array<i64: 8, 32>}, {transform_indices = @transform_5, window_bounds = array<i64: 8, 16>}, {transform_indices = @transform_6, window_bounds = array<i64: 8, 1>}, {transform_indices = @transform_7, window_bounds = array<i64: 1, 8, 128>}]} {
    %c0 = arith.constant 0 : index
    %c0_0 = arith.constant 0 : index
    %0 = vector.load %arg4[%c0, %c0_0] : memref<8x32xf32, #tpu.memory_space<vmem>>, vector<8x32xf32>
    %1 = arith.mulf %0, %0 : vector<8x32xf32>
    %c0_1 = arith.constant 0 : index
    %c0_2 = arith.constant 0 : index
    %2 = vector.load %arg5[%c0_1, %c0_2] : memref<8x32xf32, #tpu.memory_space<vmem>>, vector<8x32xf32>
    %3 = math.exp %2 : vector<8x32xf32>
    %4 = arith.addf %1, %3 : vector<8x32xf32>
    %c0_3 = arith.constant 0 : index
    %c0_4 = arith.constant 0 : index
    %5 = vector.load %arg3[%c0_3, %c0_4] : memref<1x16xf32, #tpu.memory_space<vmem>>, vector<1x16xf32>
    %c0_5 = arith.constant 0 : index
    %c0_6 = arith.constant 0 : index
    %6 = vector.load %arg1[%c0_5, %c0_6] : memref<32x16xf32, #tpu.memory_space<vmem>>, vector<32x16xf32>
    %cst = arith.constant dense<0.000000e+00> : vector<8x16xf32>
    %7 = tpu.matmul %4, %6, %cst {dimension_numbers = #tpu.dot_dimension_numbers<[1], [0], [0], [1], [0, 0, 1, 1], [], []>} : vector<8x32xf32>, vector<32x16xf32>, vector<8x16xf32> -> vector<8x16xf32>
    %8 = vector.broadcast %5 : vector<1x16xf32> to vector<8x16xf32>
    %9 = arith.addf %8, %7 : vector<8x16xf32>
    %c0_7 = arith.constant 0 : index
    %c0_8 = arith.constant 0 : index
    %10 = vector.load %arg2[%c0_7, %c0_8] : memref<32x16xf32, #tpu.memory_space<vmem>>, vector<32x16xf32>
    %cst_9 = arith.constant dense<0.000000e+00> : vector<8x16xf32>
    %11 = tpu.matmul %0, %10, %cst_9 {dimension_numbers = #tpu.dot_dimension_numbers<[1], [0], [0], [1], [0, 0, 1, 1], [], []>} : vector<8x32xf32>, vector<32x16xf32>, vector<8x16xf32> -> vector<8x16xf32>
    %12 = arith.addf %9, %11 : vector<8x16xf32>
    %c0_10 = arith.constant 0 : index
    %c0_11 = arith.constant 0 : index
    %13 = vector.load %arg6[%c0_10, %c0_11] : memref<8x16xf32, #tpu.memory_space<vmem>>, vector<8x16xf32>
    %14 = arith.mulf %12, %13 : vector<8x16xf32>
    %c0_12 = arith.constant 0 : index
    %c0_13 = arith.constant 0 : index
    %15 = vector.load %arg7[%c0_12, %c0_13] : memref<8x1xf32, #tpu.memory_space<vmem>>, vector<8x1xf32>
    %16 = vector.broadcast %15 : vector<8x1xf32> to vector<8x16xf32>
    %17 = arith.mulf %14, %16 : vector<8x16xf32>
    %18 = vector.shape_cast %17 : vector<8x16xf32> to vector<1x8x16xf32>
    %cst_14 = arith.constant dense<0.000000e+00> : vector<1xf32>
    %19 = vector.multi_reduction <add>, %18, %cst_14 [1, 2] : vector<1x8x16xf32> to vector<1xf32>
    %20 = vector.shape_cast %19 : vector<1xf32> to vector<1x1x1xf32>
    %21 = vector.extract %20[0, 0, 0] : f32 from vector<1x1x1xf32>
    %22 = vector.broadcast %21 : f32 to vector<1x8x128xf32>
    %c0_15 = arith.constant 0 : index
    %c0_16 = arith.constant 0 : index
    %c0_17 = arith.constant 0 : index
    %23 = vector.load %arg8[%c0_15, %c0_16, %c0_17] : memref<1x8x128xf32, #tpu.memory_space<vmem>>, vector<1x8x128xf32>
    tpu.vector_store %arg8[%c0_15, %c0_16, %c0_17], %22 {strides = array<i32>} : memref<1x8x128xf32, #tpu.memory_space<vmem>>, vector<1x8x128xf32>,
    return
  }
  func.func @transform_0(%arg0: i32) -> (i32, i32) {
    %c0_i32 = arith.constant 0 : i32
    %c0_i32_0 = arith.constant 0 : i32
    %c0_i32_1 = arith.constant 0 : i32
    return %c0_i32, %c0_i32_0 : i32, i32
  }
  func.func @transform_1(%arg0: i32) -> (i32, i32) {
    %c0_i32 = arith.constant 0 : i32
    %c0_i32_0 = arith.constant 0 : i32
    %c0_i32_1 = arith.constant 0 : i32
    return %c0_i32, %c0_i32_0 : i32, i32
  }
  func.func @transform_2(%arg0: i32) -> (i32, i32) {
    %c0_i32 = arith.constant 0 : i32
    %c0_i32_0 = arith.constant 0 : i32
    %c0_i32_1 = arith.constant 0 : i32
    return %c0_i32, %c0_i32_0 : i32, i32
  }
  func.func @transform_3(%arg0: i32) -> (i32, i32) {
    %c0_i32 = arith.constant 0 : i32
    %c0_i32_0 = arith.constant 0 : i32
    return %arg0, %c0_i32 : i32, i32
  }
  func.func @transform_4(%arg0: i32) -> (i32, i32) {
    %c0_i32 = arith.constant 0 : i32
    %c0_i32_0 = arith.constant 0 : i32
    return %arg0, %c0_i32 : i32, i32
  }
  func.func @transform_5(%arg0: i32) -> (i32, i32) {
    %c0_i32 = arith.constant 0 : i32
    %c0_i32_0 = arith.constant 0 : i32
    return %arg0, %c0_i32 : i32, i32
  }
  func.func @transform_6(%arg0: i32) -> (i32, i32) {
    %c0_i32 = arith.constant 0 : i32
    %c0_i32_0 = arith.constant 0 : i32
    return %arg0, %c0_i32 : i32, i32
  }
  func.func @transform_7(%arg0: i32) -> (i32, i32, i32) {
    %c0_i32 = arith.constant 0 : i32
    %c0_i32_0 = arith.constant 0 : i32
    %c0_i32_1 = arith.constant 0 : i32
    return %arg0, %c0_i32, %c0_i32_0 : i32, i32, i32
  }
}

</mosaic_0001>

<llo_original>
// kernel: tpu_custom_call.1
$region0: #{tpu_custom_call.1}
  #allocation0 [shape = 'u32[]', space=smem, size = 0x4, offset = 0x4, fixed_abs, tag = 'smem constant byte address 0x4 - core index']
  #allocation1 [shape = 'u32[72,128]{1,0:T(1,128)}', space=vmem, size = 0x9000, scoped, tag = 'internal scratch']
  %s0 = inlined_call_operand.vmem [shape: f32[32,16], index: 0, kind: input, shape index: {}]
  %s1 = inlined_call_operand.vmem [shape: f32[32,16], index: 1, kind: input, shape index: {}]
  %s2 = inlined_call_operand.vmem [shape: f32[1,16], index: 2, kind: input, shape index: {}]
  %s3 = inlined_call_operand.vmem [shape: f32[8,32], index: 3, kind: input, shape index: {}]
  %s4 = inlined_call_operand.vmem [shape: f32[8,32], index: 4, kind: input, shape index: {}]
  %s5 = inlined_call_operand.vmem [shape: f32[8,16], index: 5, kind: input, shape index: {}]
  %s6 = inlined_call_operand.vmem [shape: f32[8,1], index: 6, kind: input, shape index: {}]
  %s7 = inlined_call_operand.hbm [shape: f32[1,8,128], index: 7, kind: output, shape index: {}]
  %s8 = sld [smem:[#allocation0]]
  $region38: #{tpu_custom_call.1} parent=0
    _
  %s10 = ssub.s32 1, %s8
  %s11 = scalar_select 0, %s10, %s8
  $region1: #{tpu_custom_call.1} parent=0
    #allocation2 [shape = 'u8[4096]{0}', space=vmem, size = 0x1000, scoped, tag = 'output window, operand 0, single buffered']
    #allocation3 [shape = 's32[1]{0}', space=sflag, size = 0x4, scoped, tag = 'scoped memory for tpu_custom_call.1']
    %12 = vsyncpa [#allocation3], 0
    // Predicated region
    $region2: #{tpu_custom_call.1} parent=1 // pred_check
      _
    $region3: #{tpu_custom_call.1} parent=1 // pred_check_branch
      %14 = sbr.rel (0) target = $region5
    $region4: #{tpu_custom_call.1} parent=1 // pred_region
      _
    $region5: #{tpu_custom_call.1} parent=1 // pred_fallthru
      _
    // Predicated region
    $region6: #{tpu_custom_call.1} parent=1 // pred_check
      _
    $region7: #{tpu_custom_call.1} parent=1 // pred_check_branch
      %16 = sbr.rel (0) target = $region9
    $region8: #{tpu_custom_call.1} parent=1 // pred_region
      _
    $region9: #{tpu_custom_call.1} parent=1 // pred_fallthru
      _
    // Predicated region
    $region10: #{tpu_custom_call.1} parent=1 // pred_check
      _
    $region11: #{tpu_custom_call.1} parent=1 // pred_check_branch
      %18 = sbr.rel (0) target = $region13
    $region12: #{tpu_custom_call.1} parent=1 // pred_region
      _
    $region13: #{tpu_custom_call.1} parent=1 // pred_fallthru
      _
    // Predicated region
    $region14: #{tpu_custom_call.1} parent=1 // pred_check
      _
    $region15: #{tpu_custom_call.1} parent=1 // pred_check_branch
      %20 = sbr.rel (0) target = $region17
    $region16: #{tpu_custom_call.1} parent=1 // pred_region
      _
    $region17: #{tpu_custom_call.1} parent=1 // pred_fallthru
      _
    // Predicated region
    $region18: #{tpu_custom_call.1} parent=1 // pred_check
      _
    $region19: #{tpu_custom_call.1} parent=1 // pred_check_branch
      %22 = sbr.rel (0) target = $region21
    $region20: #{tpu_custom_call.1} parent=1 // pred_region
      _
    $region21: #{tpu_custom_call.1} parent=1 // pred_fallthru
      _
    // Predicated region
    $region22: #{tpu_custom_call.1} parent=1 // pred_check
      _
    $region23: #{tpu_custom_call.1} parent=1 // pred_check_branch
      %24 = sbr.rel (0) target = $region25
    $region24: #{tpu_custom_call.1} parent=1 // pred_region
      _
    $region25: #{tpu_custom_call.1} parent=1 // pred_fallthru
      _
    // Predicated region
    $region26: #{tpu_custom_call.1} parent=1 // pred_check
      _
    $region27: #{tpu_custom_call.1} parent=1 // pred_check_branch
      %26 = sbr.rel (0) target = $region29
    $region28: #{tpu_custom_call.1} parent=1 // pred_region
      _
    $region29: #{tpu_custom_call.1} parent=1 // pred_fallthru
      _
    %v27 = vld [vmem:[%s3] sm:$0xff]
    %v28 = vmul.f32 %v27, %v27
    %v29 = vld [vmem:[%s4] sm:$0xff]
    %v30 = vmul.f32 %v29, 1.442695
    %v31 = vpow.pop %v30
    %v32 = vadd.f32 %v28, %v31
    %v33 = vld [vmem:[%s2] sm:$0x1]
    %v34 = vld [vmem:[%s0] sm:$0xff]
    %v35 = vld [vmem:[%s0 + $0x8] sm:$0xff]
    %v36 = vld [vmem:[%s0 + $0x10] sm:$0xff]
    %v37 = vld [vmem:[%s0 + $0x18] sm:$0xff]
    %vm38 = vcmask 261120
    %v40 = vsel %vm38, %v32, 0
    %42 = vmatpush.msra.mxu0 0.0
    %43 = vmatpush.msra.mxu0 0.0
    %44 = vmatpush.msra.mxu0 0.0
    %45 = vmatpush.msra.mxu0 0.0
    %46 = vmatpush.msra.mxu0 0.0
    %47 = vmatpush.msra.mxu0 0.0
    %48 = vmatpush.msra.mxu0 0.0
    %49 = vmatpush.msra.mxu0 0.0
    %50 = vmatpush.msra.mxu0 0.0
    %51 = vmatpush.msra.mxu0 0.0
    %52 = vmatpush.msra.mxu0 0.0
    %53 = vmatpush.msra.mxu0 0.0
    %54 = vmatpush.msra.mxu0 %v37
    %55 = vmatpush.msra.mxu0 %v36
    %56 = vmatpush.msra.mxu0 %v35
    %57 = vmatpush.msra.mxu0 %v34
    %58 = vmatmul.f32.gmra.mxu0 %v40
    %v59 = vpop.f32.mrf.mxu0
    %v60 = vadd.f32 0.0, %v59
    %61 = vdwg.mxu0
    %v63 = vperm.slane %v33, 0
    %v65 = vadd.f32 %v63, %v60
    %v66 = vld [vmem:[%s1] sm:$0xff]
    %v67 = vld [vmem:[%s1 + $0x8] sm:$0xff]
    %v68 = vld [vmem:[%s1 + $0x10] sm:$0xff]
    %v69 = vld [vmem:[%s1 + $0x18] sm:$0xff]
    %v71 = vsel %vm38, %v27, 0
    %73 = vmatpush.msra.mxu0 0.0
    %74 = vmatpush.msra.mxu0 0.0
    %75 = vmatpush.msra.mxu0 0.0
    %76 = vmatpush.msra.mxu0 0.0
    %77 = vmatpush.msra.mxu0 0.0
    %78 = vmatpush.msra.mxu0 0.0
    %79 = vmatpush.msra.mxu0 0.0
    %80 = vmatpush.msra.mxu0 0.0
    %81 = vmatpush.msra.mxu0 0.0
    %82 = vmatpush.msra.mxu0 0.0
    %83 = vmatpush.msra.mxu0 0.0
    %84 = vmatpush.msra.mxu0 0.0
    %85 = vmatpush.msra.mxu0 %v69
    %86 = vmatpush.msra.mxu0 %v68
    %87 = vmatpush.msra.mxu0 %v67
    %88 = vmatpush.msra.mxu0 %v66
    %89 = vmatmul.f32.gmra.mxu0 %v71
    %v90 = vpop.f32.mrf.mxu0
    %v91 = vadd.f32 0.0, %v90
    %92 = vdwg.mxu0
    %v93 = vadd.f32 %v65, %v91
    %v94 = vld [vmem:[%s5] sm:$0xff]
    %v95 = vmul.f32 %v93, %v94
    %v96 = vld [vmem:[%s6] sm:$0xff]
    %98 = vset.pattern.permute.xlu0 0
    %99 = vperm.xlu0 %98, %v96
    %v100 = vpop.permute.xlu0 %99
    %v102 = vmul.f32 %v95, %v100
    %vm103 = vcmask 130048
    %v104 = vsel %vm103, %v102, 0.0
    %105 = vadd.xlane.f32.xlu0 %v104
    %v106 = vpop.xlane.xlu0 %105
    %v107 = vrot.slane %v106, 4
    %v108 = vadd.f32 %v106, %v107
    %v109 = vrot.slane %v108, 2
    %v110 = vadd.f32 %v108, %v109
    %v111 = vrot.slane %v110, 1
    %v112 = vadd.f32 %v110, %v111
    %s113 = vtos %v112
    %v114 = vstv %s113
    %115 = vst [vmem:[#allocation2] sm:$0xff] %v114
    // Predicated region
    $region30: #{tpu_custom_call.1} parent=1 // pred_check
      _
    $region31: #{tpu_custom_call.1} parent=1 // pred_check_branch
      %117 = sbr.rel (0) target = $region33
    $region32: #{tpu_custom_call.1} parent=1 // pred_region
      %119 = vsyncadd [#allocation3], 0
      %s121 = sshll.u32 [#allocation2], 4
      %s122 = int_to_ptr.vmem [resolvable:$true] %s121
      %s123 = sshll.u32 %s7, 4
      %s124 = int_to_ptr.hbm [resolvable:$true] %s123
      %126 = dma.vmem_to_hbm [thread:$0]  %s122, 128, %s124, [#allocation3]
    $region33: #{tpu_custom_call.1} parent=1 // pred_fallthru
      _
    // Predicated region
    $region34: #{tpu_custom_call.1} parent=1 // pred_check
      _
    $region35: #{tpu_custom_call.1} parent=1 // pred_check_branch
      %128 = sbr.rel (0) target = $region37
    $region36: #{tpu_custom_call.1} parent=1 // pred_region
      %130 = dma.done [#allocation3], 128
    $region37: #{tpu_custom_call.1} parent=1 // pred_fallthru
      _
    %131 = vsyncpa [#allocation3], 1

</llo_original>
